<compile_context>
chip_gen: v7x
topology: tpu7x:2x2x1
jax: 0.10.0
libtpu: 0.0.40
codegen_flags: <defaults>
</compile_context>

<pallas_src>
import functools

import jax
import jax.numpy as jnp
from jax import lax
from jax.experimental import pallas as pl
from jax.experimental.pallas import tpu as pltpu

_DEFAULT_REPEATS = (2, 4, 8)
_LANE = 128
_SELECT_MAX_T = 16                      # below this, use the VPU select path
_TARGET_LO = 1024                       # lane width cap for offset-mode blocks
_BLOCK_BYTE_BUDGET = 2 * 1024 * 1024    # per (in+out) block buffer (f32)
_MAX_TR = 512                           # row-tile cap
_OFFSET_FUSE_MAX_T = 512                # fuse the pad in-kernel only up to this T


def _expand_kernel(x_ref, o_ref, *, r, left, t_in, li, lo, aligned, use_select):
    """One (tr, lo) output tile of out[:, j] = x_row[clamp((j - left) // r, 0, T-1)].

    aligned (left == 0): x_ref is input block tb of width li; since lo = r*li
        the block offsets cancel and the local mapping is simply j_local // r.
    offset  (left > 0):  x_ref is the full input row (li == T); the mapping
        uses the global output column with edge clamping (fused ReplicationPad1d).
    The source-index mapping is expressed division-free as interval tests.
    """
    tb = pl.program_id(1)
    x = x_ref[...]
    rows = x.shape[0]

    if aligned:
        if t_in % li != 0:  # static condition
            # Zero the garbage tail of a ragged final input block so stray
            # Inf/NaN cannot leak into valid outputs through 0 * garbage.
            col = lax.broadcasted_iota(jnp.int32, x.shape, 1)
            x = jnp.where(col < (t_in - tb * li), x, jnp.zeros_like(x))
        q = lax.broadcasted_iota(jnp.int32, (1, lo), 1)            # local col
    else:
        jg = tb * lo + lax.broadcasted_iota(jnp.int32, (1, lo), 1)  # global col
        q = jnp.maximum(jg - left, 0)                               # left clamp

    if use_select:
        # Tiny-T path: unrolled lane-broadcast + select (pure VPU, exact).
        out = jnp.broadcast_to(x[:, 0:1], (rows, lo))
        for i in range(1, li):
            if (not aligned) and i == li - 1:
                cond = q >= i * r                                   # right clamp
            else:
                cond = (q >= i * r) & (q < (i + 1) * r)
            out = jnp.where(cond, jnp.broadcast_to(x[:, i:i + 1], (rows, lo)), out)
        o_ref[...] = out.astype(o_ref.dtype)
        return

    # 0/1 expansion matrix built in-kernel: E[i, j] = (source(j) == i).
    row = lax.broadcasted_iota(jnp.int32, (li, lo), 0)
    low = row * r
    cond = (q >= low) & (q < low + r)
    if not aligned:
        cond = cond | ((row == li - 1) & (q >= low))                # right clamp
    e = jnp.where(cond, jnp.ones((), jnp.bfloat16), jnp.zeros((), jnp.bfloat16))

    if x.dtype == jnp.bfloat16:
        acc = jnp.dot(x, e, preferred_element_type=jnp.float32)
    else:
        # Exact 3-way bf16 split of the tile: x == h1 + h2 + h3 elementwise, so
        # the 0/1 matmuls with f32 accumulation reconstruct the bits exactly.
        xf = x.astype(jnp.float32)
        h1 = xf.astype(jnp.bfloat16)
        r1 = xf - h1.astype(jnp.float32)
        h2 = r1.astype(jnp.bfloat16)
        h3 = (r1 - h2.astype(jnp.float32)).astype(jnp.bfloat16)
        acc = (jnp.dot(h1, e, preferred_element_type=jnp.float32)
               + jnp.dot(h2, e, preferred_element_type=jnp.float32)
               + jnp.dot(h3, e, preferred_element_type=jnp.float32))
    o_ref[...] = acc.astype(o_ref.dtype)


def _tile_map_pallas(fm, r, out_len, left=0):
    """out[b, c, j] = fm[b, c, clamp((j - left) // r, 0, T-1)] for j in [0, out_len).

    left == 0 and out_len <= T*r  -> sound_tile fused with a crop.
    left  > 0                     -> sound_tile fused with ReplicationPad1d edges.
    """
    B, C, T = fm.shape
    r, left, L = int(r), int(left), int(out_len)
    assert r >= 1 and T >= 1 and L >= 1
    R = B * C
    x2 = fm.reshape(R, T)                       # contiguous -> free reshape

    if left == 0:
        assert L <= T * r
        li = T if T <= _LANE else _LANE         # keep matmul K minimal
        lo = L if li == T else r * li           # output block t sources input block t
        in_index_map = lambda i, t: (i, t)
    else:
        li = T                                  # full row (fetched once per row block)
        lo = L if L <= _TARGET_LO else _TARGET_LO
        in_index_map = lambda i, t: (i, 0)

    use_select = li <= _SELECT_MAX_T

    # Row tile: big enough to amortize per-step overhead (~0.35 us), bounded so
    # the double-buffered in+out blocks stay well inside the scoped-VMEM limit.
    tr_cap = _BLOCK_BYTE_BUDGET // (4 * (li + lo))
    tr_cap = max(8, min(_MAX_TR, (tr_cap // 8) * 8))
    tr = R if R <= tr_cap else tr_cap

    grid = (pl.cdiv(R, tr), pl.cdiv(L, lo))

    kernel = functools.partial(_expand_kernel, r=r, left=left, t_in=T,
                               li=li, lo=lo, aligned=(left == 0),
                               use_select=use_select)

    out2 = pl.pallas_call(
        kernel,
        out_shape=jax.ShapeDtypeStruct((R, L), fm.dtype),
        grid_spec=pltpu.PrefetchScalarGridSpec(
            num_scalar_prefetch=0,
            grid=grid,
            in_specs=[pl.BlockSpec((tr, li), in_index_map)],
            out_specs=pl.BlockSpec((tr, lo), lambda i, t: (i, t)),
        ),
        compiler_params=pltpu.CompilerParams(
            dimension_semantics=("parallel", "parallel"),
            vmem_limit_bytes=32 * 1024 * 1024),
    )(x2)
    return out2.reshape(B, C, L)


def sound_tile_pallas(fm, n_tile=2):
    """Pallas TilingBlock.sound_tile: out[b, c, j] = fm[b, c, j // n_tile]."""
    return _tile_map_pallas(fm, n_tile, out_len=fm.shape[2] * int(n_tile), left=0)


def tiling_block(spect, feature_maps, repeats=_DEFAULT_REPEATS):
    """Pallas implementation of TilingBlock.forward."""
    assert len(feature_maps) == len(repeats)
    spect_len = spect.shape[2]
    outs = []
    for fm, rep in zip(feature_maps, repeats):
        assert fm.shape[0] == spect.shape[0]
        T = fm.shape[2]
        up_len = T * int(rep)
        if up_len >= spect_len:
            # equal / crop: only spect_len columns are ever produced (fused).
            outs.append(_tile_map_pallas(fm, rep, out_len=spect_len, left=0))
        else:
            # ReplicationPad1d((ld//2, ld)) -- the module pads MORE than ld.
            ld = spect_len - up_len
            left, right = ld // 2, ld
            total = up_len + left + right
            if T <= _OFFSET_FUSE_MAX_T:
                # pad fused into the kernel: single HBM pass.
                outs.append(_tile_map_pallas(fm, rep, out_len=total, left=left))
            else:
                # TODO(synk): very long pad-branch inputs fall back to the
                # aligned kernel + cheap edge-pad glue (one extra concat pass)
                # to keep the fused kernel's matmul K and VMEM use bounded.
                up = _tile_map_pallas(fm, rep, out_len=up_len, left=0)
                pieces = []
                if left:
                    pieces.append(jnp.repeat(up[:, :, :1], left, axis=2))
                pieces.append(up)
                if right:
                    pieces.append(jnp.repeat(up[:, :, -1:], right, axis=2))
                outs.append(jnp.concatenate(pieces, axis=2))
    return outs


# ----------------------------- pure-JAX reference ---------------------------

def tiling_block_ref(spect, feature_maps, repeats=_DEFAULT_REPEATS):
    spect_len = spect.shape[2]
    outs = []
    for fm, rep in zip(feature_maps, repeats):
        t = jnp.repeat(fm, rep, axis=2)          # == sound_tile
        if t.shape[2] == spect_len:
            outs.append(t)
            continue
        ld = spect_len - t.shape[2]
        if ld < 0:
            outs.append(t[:, :, :spect_len])
        else:
            left, right = ld // 2, ld
            pieces = []
            if left:
                pieces.append(jnp.repeat(t[:, :, :1], left, axis=2))
            pieces.append(t)
            if right:
                pieces.append(jnp.repeat(t[:, :, -1:], right, axis=2))
            outs.append(jnp.concatenate(pieces, axis=2))
    return outs


if __name__ == "__main__":
    key = jax.random.PRNGKey(0)
    ks = jax.random.split(key, 12)
    repeats = [2, 4, 8]

    def check(got, want, tag):
        for n, (g, w) in enumerate(zip(got, want)):
            g = jax.block_until_ready(g)
            assert g.shape == w.shape, (tag, n, g.shape, w.shape)
            assert bool(jnp.array_equal(g, w)), (tag, n, "mismatch")

    # 1) Small shapes: VPU select path; equal / crop / fused-pad branches.
    spect = jax.random.normal(ks[0], (2, 4, 16), dtype=jnp.float32)
    fms = [
        jax.random.normal(ks[1], (2, 8, 8), dtype=jnp.float32),   # 8*2 = 16 == 16 (equal)
        jax.random.normal(ks[2], (2, 8, 5), dtype=jnp.float32),   # 5*4 = 20 >  16 (crop)
        jax.random.normal(ks[3], (2, 8, 1), dtype=jnp.float32),   # 1*8 =  8 <  16 (pad)
    ]
    check(tiling_block(spect, fms, repeats),
          tiling_block_ref(spect, fms, repeats), "small")

    # 2) Moderate shapes: blocked 128-lane MXU path, ragged last output blocks,
    #    and the fused ReplicationPad1d path at size.
    spect2 = jax.random.normal(ks[4], (2, 8, 1000), dtype=jnp.float32)
    fms2 = [
        jax.random.normal(ks[5], (2, 8, 512), dtype=jnp.float32),  # *2 -> 1024, crop 1000
        jax.random.normal(ks[6], (2, 8, 256), dtype=jnp.float32),  # *4 -> 1024, crop 1000
        jax.random.normal(ks[7], (2, 8, 120), dtype=jnp.float32),  # *8 ->  960, pad (20, 40) fused
    ]
    check(tiling_block(spect2, fms2, repeats),
          tiling_block_ref(spect2, fms2, repeats), "moderate")

    # 3) Ragged input-column blocks (T not a multiple of 128) and bf16 inputs.
    spect3 = jax.random.normal(ks[8], (2, 4, 380), dtype=jnp.float32)
    fms3 = [
        jax.random.normal(ks[9], (2, 4, 200), dtype=jnp.float32),    # crop, ragged input blocks
        jax.random.normal(ks[10], (2, 4, 96), dtype=jnp.bfloat16),   # crop, bf16 single-pass MXU
        jax.random.normal(ks[11], (2, 4, 40), dtype=jnp.bfloat16),   # pad,  bf16, fused
    ]
    check(tiling_block(spect3, fms3, repeats),
          tiling_block_ref(spect3, fms3, repeats), "mixed")

    print("KERNEL_OK")
</pallas_src>

<mosaic_0001>
module attributes {stable_mosaic.version = 11 : i64} {
  func.func @_expand_kernel(%arg0: i32, %arg1: i32, %arg2: memref<16x8xf32, #tpu.memory_space<vmem>>, %arg3: memref<16x16xf32, #tpu.memory_space<vmem>>) attributes {dimension_semantics = [#tpu.dimension_semantics<parallel>, #tpu.dimension_semantics<parallel>], iteration_bounds = array<i64: 1, 1>, scalar_prefetch = 0 : i64, scratch_operands = 0 : i64, tpu.core_type = #tpu.core_type<tc>, window_params = [{transform_indices = @transform_0, window_bounds = array<i64: 16, 8>}, {transform_indices = @transform_1, window_bounds = array<i64: 16, 16>}]} {
    %c0 = arith.constant 0 : index
    %c0_0 = arith.constant 0 : index
    %0 = vector.load %arg2[%c0, %c0_0] : memref<16x8xf32, #tpu.memory_space<vmem>>, vector<16x8xf32>
    %1 = tpu.iota {dimensions = array<i32: 1>} : vector<1x16xi32>
    %2 = vector.extract_strided_slice %0 {offsets = [0, 0], sizes = [16, 1], strides = [1, 1]} : vector<16x8xf32> to vector<16x1xf32>
    %3 = vector.shape_cast %2 : vector<16x1xf32> to vector<16x1xf32>
    %4 = vector.broadcast %3 : vector<16x1xf32> to vector<16x16xf32>
    %c2_i32 = arith.constant 2 : i32
    %5 = vector.broadcast %c2_i32 : i32 to vector<1x16xi32>
    %6 = arith.cmpi sge, %1, %5 : vector<1x16xi32>
    %c4_i32 = arith.constant 4 : i32
    %7 = vector.broadcast %c4_i32 : i32 to vector<1x16xi32>
    %8 = arith.cmpi slt, %1, %7 : vector<1x16xi32>
    %9 = arith.andi %6, %8 : vector<1x16xi1>
    %10 = vector.extract_strided_slice %0 {offsets = [0, 1], sizes = [16, 1], strides = [1, 1]} : vector<16x8xf32> to vector<16x1xf32>
    %11 = vector.shape_cast %10 : vector<16x1xf32> to vector<16x1xf32>
    %12 = vector.broadcast %11 : vector<16x1xf32> to vector<16x16xf32>
    %13 = vector.shape_cast %9 : vector<1x16xi1> to vector<1x16xi1>
    %14 = vector.broadcast %13 : vector<1x16xi1> to vector<16x16xi1>
    %15 = arith.select %14, %12, %4 : vector<16x16xi1>, vector<16x16xf32>
    %c4_i32_1 = arith.constant 4 : i32
    %16 = vector.broadcast %c4_i32_1 : i32 to vector<1x16xi32>
    %17 = arith.cmpi sge, %1, %16 : vector<1x16xi32>
    %c6_i32 = arith.constant 6 : i32
    %18 = vector.broadcast %c6_i32 : i32 to vector<1x16xi32>
    %19 = arith.cmpi slt, %1, %18 : vector<1x16xi32>
    %20 = arith.andi %17, %19 : vector<1x16xi1>
    %21 = vector.extract_strided_slice %0 {offsets = [0, 2], sizes = [16, 1], strides = [1, 1]} : vector<16x8xf32> to vector<16x1xf32>
    %22 = vector.shape_cast %21 : vector<16x1xf32> to vector<16x1xf32>
    %23 = vector.broadcast %22 : vector<16x1xf32> to vector<16x16xf32>
    %24 = vector.shape_cast %20 : vector<1x16xi1> to vector<1x16xi1>
    %25 = vector.broadcast %24 : vector<1x16xi1> to vector<16x16xi1>
    %26 = arith.select %25, %23, %15 : vector<16x16xi1>, vector<16x16xf32>
    %c6_i32_2 = arith.constant 6 : i32
    %27 = vector.broadcast %c6_i32_2 : i32 to vector<1x16xi32>
    %28 = arith.cmpi sge, %1, %27 : vector<1x16xi32>
    %c8_i32 = arith.constant 8 : i32
    %29 = vector.broadcast %c8_i32 : i32 to vector<1x16xi32>
    %30 = arith.cmpi slt, %1, %29 : vector<1x16xi32>
    %31 = arith.andi %28, %30 : vector<1x16xi1>
    %32 = vector.extract_strided_slice %0 {offsets = [0, 3], sizes = [16, 1], strides = [1, 1]} : vector<16x8xf32> to vector<16x1xf32>
    %33 = vector.shape_cast %32 : vector<16x1xf32> to vector<16x1xf32>
    %34 = vector.broadcast %33 : vector<16x1xf32> to vector<16x16xf32>
    %35 = vector.shape_cast %31 : vector<1x16xi1> to vector<1x16xi1>
    %36 = vector.broadcast %35 : vector<1x16xi1> to vector<16x16xi1>
    %37 = arith.select %36, %34, %26 : vector<16x16xi1>, vector<16x16xf32>
    %c8_i32_3 = arith.constant 8 : i32
    %38 = vector.broadcast %c8_i32_3 : i32 to vector<1x16xi32>
    %39 = arith.cmpi sge, %1, %38 : vector<1x16xi32>
    %c10_i32 = arith.constant 10 : i32
    %40 = vector.broadcast %c10_i32 : i32 to vector<1x16xi32>
    %41 = arith.cmpi slt, %1, %40 : vector<1x16xi32>
    %42 = arith.andi %39, %41 : vector<1x16xi1>
    %43 = vector.extract_strided_slice %0 {offsets = [0, 4], sizes = [16, 1], strides = [1, 1]} : vector<16x8xf32> to vector<16x1xf32>
    %44 = vector.shape_cast %43 : vector<16x1xf32> to vector<16x1xf32>
    %45 = vector.broadcast %44 : vector<16x1xf32> to vector<16x16xf32>
    %46 = vector.shape_cast %42 : vector<1x16xi1> to vector<1x16xi1>
    %47 = vector.broadcast %46 : vector<1x16xi1> to vector<16x16xi1>
    %48 = arith.select %47, %45, %37 : vector<16x16xi1>, vector<16x16xf32>
    %c10_i32_4 = arith.constant 10 : i32
    %49 = vector.broadcast %c10_i32_4 : i32 to vector<1x16xi32>
    %50 = arith.cmpi sge, %1, %49 : vector<1x16xi32>
    %c12_i32 = arith.constant 12 : i32
    %51 = vector.broadcast %c12_i32 : i32 to vector<1x16xi32>
    %52 = arith.cmpi slt, %1, %51 : vector<1x16xi32>
    %53 = arith.andi %50, %52 : vector<1x16xi1>
    %54 = vector.extract_strided_slice %0 {offsets = [0, 5], sizes = [16, 1], strides = [1, 1]} : vector<16x8xf32> to vector<16x1xf32>
    %55 = vector.shape_cast %54 : vector<16x1xf32> to vector<16x1xf32>
    %56 = vector.broadcast %55 : vector<16x1xf32> to vector<16x16xf32>
    %57 = vector.shape_cast %53 : vector<1x16xi1> to vector<1x16xi1>
    %58 = vector.broadcast %57 : vector<1x16xi1> to vector<16x16xi1>
    %59 = arith.select %58, %56, %48 : vector<16x16xi1>, vector<16x16xf32>
    %c12_i32_5 = arith.constant 12 : i32
    %60 = vector.broadcast %c12_i32_5 : i32 to vector<1x16xi32>
    %61 = arith.cmpi sge, %1, %60 : vector<1x16xi32>
    %c14_i32 = arith.constant 14 : i32
    %62 = vector.broadcast %c14_i32 : i32 to vector<1x16xi32>
    %63 = arith.cmpi slt, %1, %62 : vector<1x16xi32>
    %64 = arith.andi %61, %63 : vector<1x16xi1>
    %65 = vector.extract_strided_slice %0 {offsets = [0, 6], sizes = [16, 1], strides = [1, 1]} : vector<16x8xf32> to vector<16x1xf32>
    %66 = vector.shape_cast %65 : vector<16x1xf32> to vector<16x1xf32>
    %67 = vector.broadcast %66 : vector<16x1xf32> to vector<16x16xf32>
    %68 = vector.shape_cast %64 : vector<1x16xi1> to vector<1x16xi1>
    %69 = vector.broadcast %68 : vector<1x16xi1> to vector<16x16xi1>
    %70 = arith.select %69, %67, %59 : vector<16x16xi1>, vector<16x16xf32>
    %c14_i32_6 = arith.constant 14 : i32
    %71 = vector.broadcast %c14_i32_6 : i32 to vector<1x16xi32>
    %72 = arith.cmpi sge, %1, %71 : vector<1x16xi32>
    %c16_i32 = arith.constant 16 : i32
    %73 = vector.broadcast %c16_i32 : i32 to vector<1x16xi32>
    %74 = arith.cmpi slt, %1, %73 : vector<1x16xi32>
    %75 = arith.andi %72, %74 : vector<1x16xi1>
    %76 = vector.extract_strided_slice %0 {offsets = [0, 7], sizes = [16, 1], strides = [1, 1]} : vector<16x8xf32> to vector<16x1xf32>
    %77 = vector.shape_cast %76 : vector<16x1xf32> to vector<16x1xf32>
    %78 = vector.broadcast %77 : vector<16x1xf32> to vector<16x16xf32>
    %79 = vector.shape_cast %75 : vector<1x16xi1> to vector<1x16xi1>
    %80 = vector.broadcast %79 : vector<1x16xi1> to vector<16x16xi1>
    %81 = arith.select %80, %78, %70 : vector<16x16xi1>, vector<16x16xf32>
    %c0_7 = arith.constant 0 : index
    %c0_8 = arith.constant 0 : index
    %82 = vector.load %arg3[%c0_7, %c0_8] : memref<16x16xf32, #tpu.memory_space<vmem>>, vector<16x16xf32>
    tpu.vector_store %arg3[%c0_7, %c0_8], %81 {strides = array<i32>} : memref<16x16xf32, #tpu.memory_space<vmem>>, vector<16x16xf32>,
    return
  }
  func.func @transform_0(%arg0: i32, %arg1: i32) -> (i32, i32) {
    %c0_i32 = arith.constant 0 : i32
    return %arg0, %arg1 : i32, i32
  }
  func.func @transform_1(%arg0: i32, %arg1: i32) -> (i32, i32) {
    %c0_i32 = arith.constant 0 : i32
    return %arg0, %arg1 : i32, i32
  }
}

</mosaic_0001>

<llo_original>
// kernel: tpu_custom_call.1
$region0: #{tpu_custom_call.1}
  #allocation0 [shape = 'u32[]', space=smem, size = 0x4, offset = 0x4, fixed_abs, tag = 'smem constant byte address 0x4 - core index']
  #allocation1 [shape = 'u32[144,128]{1,0:T(1,128)}', space=vmem, size = 0x12000, scoped, tag = 'internal scratch']
  %s0 = inlined_call_operand.vmem [shape: f32[16,8], index: 0, kind: input, shape index: {}]
  %s1 = inlined_call_operand.hbm [shape: f32[16,16], index: 1, kind: output, shape index: {}]
  %s2 = sld [smem:[#allocation0]]
  $region14: #{tpu_custom_call.1} parent=0
    _
  %s4 = ssub.s32 1, %s2
  %s5 = scalar_select 0, %s4, %s2
  $region1: #{tpu_custom_call.1} parent=0
    #allocation2 [shape = 'u8[8192]{0}', space=vmem, size = 0x2000, scoped, tag = 'output window, operand 0, single buffered']
    #allocation3 [shape = 's32[1]{0}', space=sflag, size = 0x4, scoped, tag = 'scoped memory for tpu_custom_call.1']
    %6 = vsyncpa [#allocation3], 0
    // Predicated region
    $region2: #{tpu_custom_call.1} parent=1 // pred_check
      _
    $region3: #{tpu_custom_call.1} parent=1 // pred_check_branch
      %8 = sbr.rel (0) target = $region5
    $region4: #{tpu_custom_call.1} parent=1 // pred_region
      _
    $region5: #{tpu_custom_call.1} parent=1 // pred_fallthru
      _
    %v9 = vld [vmem:[%s0] sm:$0xff]
    %v10 = vld [vmem:[%s0 + $0x8] sm:$0xff]
    %v11 = vlaneseq
    %v12 = vand.u32 %v11, 127
    %14 = vset.pattern.permute.xlu0 0
    %15 = vperm.xlu0 %14, %v9
    %v16 = vpop.permute.xlu0 %15
    %19 = vset.pattern.permute.xlu0 0
    %20 = vperm.xlu0 %19, %v10
    %v21 = vpop.permute.xlu0 %20
    %vm23 = vcmp.ge.s32.totalorder %v12, 2
    %vm24 = vcmp.lt.s32.totalorder %v12, 4
    %vm25 = vmand %vm23, %vm24
    %26 = vset.pattern.permute.xlu0 1
    %27 = vperm.xlu0 %26, %v9
    %v28 = vpop.permute.xlu0 %27
    %30 = vset.pattern.permute.xlu0 1
    %31 = vperm.xlu0 %30, %v10
    %v32 = vpop.permute.xlu0 %31
    %v34 = vsel %vm25, 1, 0
    %vm35 = vcmp.eq.s32.totalorder %v34, 1
    %v36 = vsel %vm35, %v28, %v16
    %v37 = vsel %vm35, %v32, %v21
    %vm38 = vcmp.ge.s32.totalorder %v12, 4
    %vm39 = vcmp.lt.s32.totalorder %v12, 6
    %vm40 = vmand %vm38, %vm39
    %41 = vset.pattern.permute.xlu0 2
    %42 = vperm.xlu0 %41, %v9
    %v43 = vpop.permute.xlu0 %42
    %45 = vset.pattern.permute.xlu0 2
    %46 = vperm.xlu0 %45, %v10
    %v47 = vpop.permute.xlu0 %46
    %v49 = vsel %vm40, 1, 0
    %vm50 = vcmp.eq.s32.totalorder %v49, 1
    %v51 = vsel %vm50, %v43, %v36
    %v52 = vsel %vm50, %v47, %v37
    %vm53 = vcmp.ge.s32.totalorder %v12, 6
    %vm54 = vcmp.lt.s32.totalorder %v12, 8
    %vm55 = vmand %vm53, %vm54
    %56 = vset.pattern.permute.xlu0 3
    %57 = vperm.xlu0 %56, %v9
    %v58 = vpop.permute.xlu0 %57
    %60 = vset.pattern.permute.xlu0 3
    %61 = vperm.xlu0 %60, %v10
    %v62 = vpop.permute.xlu0 %61
    %v64 = vsel %vm55, 1, 0
    %vm65 = vcmp.eq.s32.totalorder %v64, 1
    %v66 = vsel %vm65, %v58, %v51
    %v67 = vsel %vm65, %v62, %v52
    %vm68 = vcmp.ge.s32.totalorder %v12, 8
    %vm69 = vcmp.lt.s32.totalorder %v12, 10
    %vm70 = vmand %vm68, %vm69
    %71 = vset.pattern.permute.xlu0 4
    %72 = vperm.xlu0 %71, %v9
    %v73 = vpop.permute.xlu0 %72
    %75 = vset.pattern.permute.xlu0 4
    %76 = vperm.xlu0 %75, %v10
    %v77 = vpop.permute.xlu0 %76
    %v79 = vsel %vm70, 1, 0
    %vm80 = vcmp.eq.s32.totalorder %v79, 1
    %v81 = vsel %vm80, %v73, %v66
    %v82 = vsel %vm80, %v77, %v67
    %vm83 = vcmp.ge.s32.totalorder %v12, 10
    %vm84 = vcmp.lt.s32.totalorder %v12, 12
    %vm85 = vmand %vm83, %vm84
    %86 = vset.pattern.permute.xlu0 5
    %87 = vperm.xlu0 %86, %v9
    %v88 = vpop.permute.xlu0 %87
    %90 = vset.pattern.permute.xlu0 5
    %91 = vperm.xlu0 %90, %v10
    %v92 = vpop.permute.xlu0 %91
    %v94 = vsel %vm85, 1, 0
    %vm95 = vcmp.eq.s32.totalorder %v94, 1
    %v96 = vsel %vm95, %v88, %v81
    %v97 = vsel %vm95, %v92, %v82
    %vm98 = vcmp.ge.s32.totalorder %v12, 12
    %vm99 = vcmp.lt.s32.totalorder %v12, 14
    %vm100 = vmand %vm98, %vm99
    %101 = vset.pattern.permute.xlu0 6
    %102 = vperm.xlu0 %101, %v9
    %v103 = vpop.permute.xlu0 %102
    %105 = vset.pattern.permute.xlu0 6
    %106 = vperm.xlu0 %105, %v10
    %v107 = vpop.permute.xlu0 %106
    %v109 = vsel %vm100, 1, 0
    %vm110 = vcmp.eq.s32.totalorder %v109, 1
    %v111 = vsel %vm110, %v103, %v96
    %v112 = vsel %vm110, %v107, %v97
    %vm113 = vcmp.ge.s32.totalorder %v12, 14
    %vm114 = vcmp.lt.s32.totalorder %v12, 16
    %vm115 = vmand %vm113, %vm114
    %116 = vset.pattern.permute.xlu0 7
    %117 = vperm.xlu0 %116, %v9
    %v118 = vpop.permute.xlu0 %117
    %120 = vset.pattern.permute.xlu0 7
    %121 = vperm.xlu0 %120, %v10
    %v122 = vpop.permute.xlu0 %121
    %v124 = vsel %vm115, 1, 0
    %vm125 = vcmp.eq.s32.totalorder %v124, 1
    %v126 = vsel %vm125, %v118, %v111
    %v127 = vsel %vm125, %v122, %v112
    %vm128 = vcmask 130048
    %129 = vst.msk [vmem:[#allocation2] sm:$0xff] %vm128, %v126
    %130 = vst.msk [vmem:[#allocation2 + $0x8] sm:$0xff] %vm128, %v127
    // Predicated region
    $region6: #{tpu_custom_call.1} parent=1 // pred_check
      _
    $region7: #{tpu_custom_call.1} parent=1 // pred_check_branch
      %132 = sbr.rel (0) target = $region9
    $region8: #{tpu_custom_call.1} parent=1 // pred_region
      %s134 = ssub.s32 256, 256
      %135 = vsyncadd [#allocation3], %s134
      %s136 = sshll.u32 [#allocation2], 4
      %s137 = int_to_ptr.vmem [resolvable:$true] %s136
      %142 = dma.vmem_to_hbm [thread:$0]  %s137, 256, %s1, [#allocation3], 128, 128, 8
    $region9: #{tpu_custom_call.1} parent=1 // pred_fallthru
      _
    // Predicated region
    $region10: #{tpu_custom_call.1} parent=1 // pred_check
      _
    $region11: #{tpu_custom_call.1} parent=1 // pred_check_branch
      %144 = sbr.rel (0) target = $region13
    $region12: #{tpu_custom_call.1} parent=1 // pred_region
      %145 = dma.done [#allocation3], 256
    $region13: #{tpu_custom_call.1} parent=1 // pred_fallthru
      _
    %146 = vsyncpa [#allocation3], 1

</llo_original>
